<compile_context>
chip_gen: v5e
topology: v5e:2x2
jax: 0.10.0
libtpu: 0.0.40
codegen_flags: <defaults>
</compile_context>

<pallas_src>
import functools

import jax
import jax.numpy as jnp
from jax.experimental import pallas as pl
from jax.experimental.pallas import tpu as pltpu


def _gaussian_mlp_kernel(x_ref, w1_ref, b1_ref, w2_ref, b2_ref,
                         w3_ref, b3_ref, o_ref, *, compute_dtype):
    """Fused 3-layer MLP (tanh, tanh, linear), lane-dense batch axis.

        x  : (Bc, D)  natural-layout obs tile (transposed in-kernel)
        w1 : (H1, D)   b1 : (H1, 1)      -> h1  : (H1, Bc)
        w2 : (H2, H1)  b2 : (H2, 1)      -> h2  : (H2, Bc)
        w3 : (1,  H2)  b3 : SMEM scalar  -> out : (1,  Bc)  (lane-dense row)
    """
    x = x_ref[...].astype(compute_dtype)                          # (Bc, D)
    # Transposed contraction (x.T feeding jnp.dot) puts the batch axis on the
    # 128-wide lane dimension without any wrapper-side transpose pass.
    z1 = jnp.dot(w1_ref[...], x.T,
                 preferred_element_type=jnp.float32) + b1_ref[...]
    h1 = jnp.tanh(z1.astype(compute_dtype))                       # (H1, Bc)
    z2 = jnp.dot(w2_ref[...], h1,
                 preferred_element_type=jnp.float32) + b2_ref[...]
    h2 = jnp.tanh(z2.astype(compute_dtype))                       # (H2, Bc)
    o_ref[...] = (jnp.dot(w3_ref[...], h2,
                          preferred_element_type=jnp.float32)
                  + b3_ref[0])                                    # (1, Bc)


def _round_up(x, m):
    return pl.cdiv(x, m) * m


def _auto_compute_dtype():
    """bf16 activations where the EUP/VPU are bf16-capable (v6e / v7x)."""
    try:
        kind = jax.devices()[0].device_kind.lower()
    except Exception:
        return jnp.float32
    if ("v6" in kind) or ("v7" in kind) or ("7x" in kind):
        return jnp.bfloat16
    return jnp.float32          # v5e and older: no bf16 VPU/EUP -> keep f32


def _pick_block_rows(P, cap=16384):
    """Lane-dense batch tile: multiple of 128, <= cap, and chosen so the
    'parallel' grid has >= 2 steps whenever P > 128 (keeps both v7x TCs busy).
    For tiny batches use the full array as a single (exempt) block."""
    if P <= 128:
        return P
    half = _round_up(pl.cdiv(P, 2), 128)
    return max(128, min(cap, half))


def gaussian_mlp_baseline_forward(obs, params, *, block_rows=None,
                                  compute_dtype=None):
    """obs: (P, D) float -> baseline values (P,) float32."""
    P, D = obs.shape
    if compute_dtype is None:
        compute_dtype = _auto_compute_dtype()

    w1, b1 = params["w1"], params["b1"]      # (H1, D),  (H1,)
    w2, b2 = params["w2"], params["b2"]      # (H2, H1), (H2,)
    w3, b3 = params["w3"], params["b3"]      # (1, H2),  (1,)
    H1, H2 = w1.shape[0], w2.shape[0]

    if block_rows is None:
        block_rows = _pick_block_rows(P)
    assert block_rows > 0 and (block_rows % 128 == 0 or block_rows == P), (
        "block_rows must be a multiple of 128 (lane width) or the full batch")
    n_blocks = pl.cdiv(P, block_rows)

    kernel = functools.partial(_gaussian_mlp_kernel,
                               compute_dtype=compute_dtype)

    out = pl.pallas_call(
        kernel,
        out_shape=jax.ShapeDtypeStruct((1, P), jnp.float32),
        grid_spec=pltpu.PrefetchScalarGridSpec(
            num_scalar_prefetch=0,
            grid=(n_blocks,),
            in_specs=[
                pl.BlockSpec((block_rows, D), lambda i: (i, 0)),    # obs tile
                pl.BlockSpec((H1, D), lambda i: (0, 0)),            # W1 (resident)
                pl.BlockSpec((H1, 1), lambda i: (0, 0)),            # b1
                pl.BlockSpec((H2, H1), lambda i: (0, 0)),           # W2
                pl.BlockSpec((H2, 1), lambda i: (0, 0)),            # b2
                pl.BlockSpec((1, H2), lambda i: (0, 0)),            # W3
                pl.BlockSpec(memory_space=pltpu.MemorySpace.SMEM),  # b3 scalar
            ],
            out_specs=pl.BlockSpec((1, block_rows), lambda i: (0, i)),
        ),
        compiler_params=pltpu.CompilerParams(
            dimension_semantics=("parallel",),
            vmem_limit_bytes=32 * 1024 * 1024,
        ),
    )(obs,
      w1.astype(compute_dtype), b1.reshape(H1, 1).astype(jnp.float32),
      w2.astype(compute_dtype), b2.reshape(H2, 1).astype(jnp.float32),
      w3.astype(compute_dtype), b3.reshape(1).astype(jnp.float32))

    # .mean is (P, 1); forward() returns mean.flatten(-2) -> (P,).
    return out[0]


def _xavier_uniform(key, out_features, in_features):
    bound = jnp.sqrt(6.0 / (in_features + out_features))
    return jax.random.uniform(key, (out_features, in_features), jnp.float32,
                              minval=-bound, maxval=bound)


def init_params(key, input_dim, hidden_sizes=(32, 32), init_std=1.0):
    """Params in PyTorch nn.Linear convention: W is (out, in), b is (out,)."""
    h1, h2 = hidden_sizes
    k1, k2, k3 = jax.random.split(key, 3)
    return {
        "w1": _xavier_uniform(k1, h1, input_dim),
        "b1": jnp.zeros((h1,), jnp.float32),
        "w2": _xavier_uniform(k2, h2, h1),
        "b2": jnp.zeros((h2,), jnp.float32),
        "w3": _xavier_uniform(k3, 1, h2),
        "b3": jnp.zeros((1,), jnp.float32),
        # Learnable log_std of the Gaussian head (unused by .mean).
        "log_std": jnp.full((1,), jnp.log(init_std), jnp.float32),
    }


def _reference_forward(obs, p):
    h1 = jnp.tanh(obs @ p["w1"].T + p["b1"])
    h2 = jnp.tanh(h1 @ p["w2"].T + p["b2"])
    return (h2 @ p["w3"].T + p["b3"]).reshape(-1)


if __name__ == "__main__":
    key = jax.random.PRNGKey(0)
    k_obs, k_par, k_obs2 = jax.random.split(key, 3)

    # Small example consistent with the module: P observations, flat obs
    # dim 16, hidden sizes (32, 32), output dim 1.
    P, D = 8, 16
    obs = jax.random.normal(k_obs, (P, D), jnp.float32)
    params = init_params(k_par, D, hidden_sizes=(32, 32), init_std=1.0)
    ref = _reference_forward(obs, params)

    # 1) Tiny batch, single full-array block, exact f32 compute.
    out = gaussian_mlp_baseline_forward(obs, params, compute_dtype=jnp.float32)
    out = jax.block_until_ready(out)
    assert out.shape == (P,)
    assert jnp.allclose(out, ref, atol=1e-5, rtol=1e-5)

    # 2) Non-divisible batch, auto block (2 blocks, ragged last) and the
    #    generation-default compute dtype (bf16 activations on v6e/v7x).
    P2 = 300
    obs2 = jax.random.normal(k_obs2, (P2, D), jnp.float32)
    ref2 = _reference_forward(obs2, params)
    out2 = gaussian_mlp_baseline_forward(obs2, params)
    out2 = jax.block_until_ready(out2)
    assert out2.shape == (P2,)
    tol = 1e-5 if _auto_compute_dtype() == jnp.float32 else 1e-1
    assert jnp.allclose(out2, ref2, atol=tol, rtol=tol)

    # 3) Same batch, explicit 128-wide blocks (3 grid steps), exact f32.
    out3 = gaussian_mlp_baseline_forward(obs2, params, block_rows=128,
                                         compute_dtype=jnp.float32)
    out3 = jax.block_until_ready(out3)
    assert out3.shape == (P2,)
    assert jnp.allclose(out3, ref2, atol=1e-5, rtol=1e-5)

    print("KERNEL_OK")
</pallas_src>

<mosaic_0001>
module attributes {stable_mosaic.version = 11 : i64} {
  func.func @_gaussian_mlp_kernel(%arg0: i32, %arg1: memref<8x16xf32, #tpu.memory_space<vmem>>, %arg2: memref<32x16xf32, #tpu.memory_space<vmem>>, %arg3: memref<32x1xf32, #tpu.memory_space<vmem>>, %arg4: memref<32x32xf32, #tpu.memory_space<vmem>>, %arg5: memref<32x1xf32, #tpu.memory_space<vmem>>, %arg6: memref<1x32xf32, #tpu.memory_space<vmem>>, %arg7: memref<1xf32, #tpu.memory_space<smem>>, %arg8: memref<1x8xf32, #tpu.memory_space<vmem>>) attributes {dimension_semantics = [#tpu.dimension_semantics<parallel>], iteration_bounds = array<i64: 1>, scalar_prefetch = 0 : i64, scratch_operands = 0 : i64, tpu.core_type = #tpu.core_type<tc>, window_params = [{transform_indices = @transform_0, window_bounds = array<i64: 8, 16>}, {pipeline_mode = #tpu.pipeline_mode<synchronous>, transform_indices = @transform_1, window_bounds = array<i64: 32, 16>}, {pipeline_mode = #tpu.pipeline_mode<synchronous>, transform_indices = @transform_2, window_bounds = array<i64: 32, 1>}, {pipeline_mode = #tpu.pipeline_mode<synchronous>, transform_indices = @transform_3, window_bounds = array<i64: 32, 32>}, {pipeline_mode = #tpu.pipeline_mode<synchronous>, transform_indices = @transform_4, window_bounds = array<i64: 32, 1>}, {pipeline_mode = #tpu.pipeline_mode<synchronous>, transform_indices = @transform_5, window_bounds = array<i64: 1, 32>}, {transform_indices = @transform_6, window_bounds = array<i64: 1>}, {transform_indices = @transform_7, window_bounds = array<i64: 1, 8>}]} {
    %c0 = arith.constant 0 : index
    %c0_0 = arith.constant 0 : index
    %0 = vector.load %arg1[%c0, %c0_0] : memref<8x16xf32, #tpu.memory_space<vmem>>, vector<8x16xf32>
    %c0_1 = arith.constant 0 : index
    %c0_2 = arith.constant 0 : index
    %1 = vector.load %arg2[%c0_1, %c0_2] : memref<32x16xf32, #tpu.memory_space<vmem>>, vector<32x16xf32>
    %2 = tpu.transpose %0, [1, 0] : vector<8x16xf32> -> vector<16x8xf32>
    %cst = arith.constant dense<0.000000e+00> : vector<32x8xf32>
    %3 = tpu.matmul %1, %2, %cst {dimension_numbers = #tpu.dot_dimension_numbers<[1], [0], [0], [1], [0, 0, 1, 1], [], []>} : vector<32x16xf32>, vector<16x8xf32>, vector<32x8xf32> -> vector<32x8xf32>
    %c0_3 = arith.constant 0 : index
    %c0_4 = arith.constant 0 : index
    %4 = vector.load %arg3[%c0_3, %c0_4] : memref<32x1xf32, #tpu.memory_space<vmem>>, vector<32x1xf32>
    %5 = vector.broadcast %4 : vector<32x1xf32> to vector<32x8xf32>
    %6 = arith.addf %3, %5 : vector<32x8xf32>
    %7 = math.tanh %6 : vector<32x8xf32>
    %c0_5 = arith.constant 0 : index
    %c0_6 = arith.constant 0 : index
    %8 = vector.load %arg4[%c0_5, %c0_6] : memref<32x32xf32, #tpu.memory_space<vmem>>, vector<32x32xf32>
    %cst_7 = arith.constant dense<0.000000e+00> : vector<32x8xf32>
    %9 = tpu.matmul %8, %7, %cst_7 {dimension_numbers = #tpu.dot_dimension_numbers<[1], [0], [0], [1], [0, 0, 1, 1], [], []>} : vector<32x32xf32>, vector<32x8xf32>, vector<32x8xf32> -> vector<32x8xf32>
    %c0_8 = arith.constant 0 : index
    %c0_9 = arith.constant 0 : index
    %10 = vector.load %arg5[%c0_8, %c0_9] : memref<32x1xf32, #tpu.memory_space<vmem>>, vector<32x1xf32>
    %11 = vector.broadcast %10 : vector<32x1xf32> to vector<32x8xf32>
    %12 = arith.addf %9, %11 : vector<32x8xf32>
    %13 = math.tanh %12 : vector<32x8xf32>
    %c0_10 = arith.constant 0 : index
    %c0_11 = arith.constant 0 : index
    %14 = vector.load %arg6[%c0_10, %c0_11] : memref<1x32xf32, #tpu.memory_space<vmem>>, vector<1x32xf32>
    %cst_12 = arith.constant dense<0.000000e+00> : vector<1x8xf32>
    %15 = tpu.matmul %14, %13, %cst_12 {dimension_numbers = #tpu.dot_dimension_numbers<[1], [0], [0], [1], [0, 0, 1, 1], [], []>} : vector<1x32xf32>, vector<32x8xf32>, vector<1x8xf32> -> vector<1x8xf32>
    %c0_13 = arith.constant 0 : index
    %16 = memref.load %arg7[%c0_13] : memref<1xf32, #tpu.memory_space<smem>>
    %17 = vector.broadcast %16 : f32 to vector<1x8xf32>
    %18 = arith.addf %15, %17 : vector<1x8xf32>
    %c0_14 = arith.constant 0 : index
    %c0_15 = arith.constant 0 : index
    %19 = vector.load %arg8[%c0_14, %c0_15] : memref<1x8xf32, #tpu.memory_space<vmem>>, vector<1x8xf32>
    tpu.vector_store %arg8[%c0_14, %c0_15], %18 {strides = array<i32>} : memref<1x8xf32, #tpu.memory_space<vmem>>, vector<1x8xf32>,
    return
  }
  func.func @transform_0(%arg0: i32) -> (i32, i32) {
    %c0_i32 = arith.constant 0 : i32
    %c0_i32_0 = arith.constant 0 : i32
    return %arg0, %c0_i32 : i32, i32
  }
  func.func @transform_1(%arg0: i32) -> (i32, i32) {
    %c0_i32 = arith.constant 0 : i32
    %c0_i32_0 = arith.constant 0 : i32
    %c0_i32_1 = arith.constant 0 : i32
    return %c0_i32, %c0_i32_0 : i32, i32
  }
  func.func @transform_2(%arg0: i32) -> (i32, i32) {
    %c0_i32 = arith.constant 0 : i32
    %c0_i32_0 = arith.constant 0 : i32
    %c0_i32_1 = arith.constant 0 : i32
    return %c0_i32, %c0_i32_0 : i32, i32
  }
  func.func @transform_3(%arg0: i32) -> (i32, i32) {
    %c0_i32 = arith.constant 0 : i32
    %c0_i32_0 = arith.constant 0 : i32
    %c0_i32_1 = arith.constant 0 : i32
    return %c0_i32, %c0_i32_0 : i32, i32
  }
  func.func @transform_4(%arg0: i32) -> (i32, i32) {
    %c0_i32 = arith.constant 0 : i32
    %c0_i32_0 = arith.constant 0 : i32
    %c0_i32_1 = arith.constant 0 : i32
    return %c0_i32, %c0_i32_0 : i32, i32
  }
  func.func @transform_5(%arg0: i32) -> (i32, i32) {
    %c0_i32 = arith.constant 0 : i32
    %c0_i32_0 = arith.constant 0 : i32
    %c0_i32_1 = arith.constant 0 : i32
    return %c0_i32, %c0_i32_0 : i32, i32
  }
  func.func @transform_6(%arg0: i32) -> i32 {
    %c0_i32 = arith.constant 0 : i32
    %c0_i32_0 = arith.constant 0 : i32
    return %c0_i32 : i32
  }
  func.func @transform_7(%arg0: i32) -> (i32, i32) {
    %c0_i32 = arith.constant 0 : i32
    %c0_i32_0 = arith.constant 0 : i32
    return %c0_i32, %arg0 : i32, i32
  }
}

</mosaic_0001>

<llo_original>
// kernel: tpu_custom_call.1
$region0: #{tpu_custom_call.1}
  #allocation0 [shape = 'u32[]', space=smem, size = 0x4, offset = 0x4, fixed_abs, tag = 'smem constant byte address 0x4 - core index']
  #allocation1 [shape = 'u32[72,128]{1,0:T(1,128)}', space=vmem, size = 0x9000, scoped, tag = 'internal scratch']
  #allocation2 [shape = 'f32[1]{0:T(128)S(6)}', space=smem, size = 0x200, scoped, tag = 'scoped memory for tpu_custom_call.1']
  %s0 = inlined_call_operand.vmem [shape: f32[8,16], index: 0, kind: input, shape index: {}]
  %s1 = inlined_call_operand.vmem [shape: f32[32,16], index: 1, kind: input, shape index: {}]
  %s2 = inlined_call_operand.vmem [shape: f32[32,1], index: 2, kind: input, shape index: {}]
  %s3 = inlined_call_operand.vmem [shape: f32[32,32], index: 3, kind: input, shape index: {}]
  %s4 = inlined_call_operand.vmem [shape: f32[32,1], index: 4, kind: input, shape index: {}]
  %s5 = inlined_call_operand.vmem [shape: f32[1,32], index: 5, kind: input, shape index: {}]
  %s6 = inlined_call_operand.<no memory space> [shape: f32[1], index: 6, kind: input, shape index: {}]
  %s7 = inlined_call_operand.hbm [shape: f32[1,8], index: 7, kind: output, shape index: {}]
  %s8 = sld [smem:[#allocation0]]
  $region38: #{tpu_custom_call.1} parent=0
    _
  %s10 = ssub.s32 1, %s8
  %s11 = scalar_select 0, %s10, %s8
  %12 = sst [smem:[#allocation2]] %s6
  $region1: #{tpu_custom_call.1} parent=0
    #allocation3 [shape = 'u8[512]{0}', space=vmem, size = 0x400, scoped, tag = 'output window, operand 0, single buffered']
    #allocation4 [shape = 's32[1]{0}', space=sflag, size = 0x4, scoped, tag = 'scoped memory for tpu_custom_call.1']
    %13 = vsyncpa [#allocation4], 0
    // Predicated region
    $region2: #{tpu_custom_call.1} parent=1 // pred_check
      _
    $region3: #{tpu_custom_call.1} parent=1 // pred_check_branch
      %15 = sbr.rel (0) target = $region5
    $region4: #{tpu_custom_call.1} parent=1 // pred_region
      _
    $region5: #{tpu_custom_call.1} parent=1 // pred_fallthru
      _
    // Predicated region
    $region6: #{tpu_custom_call.1} parent=1 // pred_check
      _
    $region7: #{tpu_custom_call.1} parent=1 // pred_check_branch
      %17 = sbr.rel (0) target = $region9
    $region8: #{tpu_custom_call.1} parent=1 // pred_region
      _
    $region9: #{tpu_custom_call.1} parent=1 // pred_fallthru
      _
    // Predicated region
    $region10: #{tpu_custom_call.1} parent=1 // pred_check
      _
    $region11: #{tpu_custom_call.1} parent=1 // pred_check_branch
      %19 = sbr.rel (0) target = $region13
    $region12: #{tpu_custom_call.1} parent=1 // pred_region
      _
    $region13: #{tpu_custom_call.1} parent=1 // pred_fallthru
      _
    // Predicated region
    $region14: #{tpu_custom_call.1} parent=1 // pred_check
      _
    $region15: #{tpu_custom_call.1} parent=1 // pred_check_branch
      %21 = sbr.rel (0) target = $region17
    $region16: #{tpu_custom_call.1} parent=1 // pred_region
      _
    $region17: #{tpu_custom_call.1} parent=1 // pred_fallthru
      _
    // Predicated region
    $region18: #{tpu_custom_call.1} parent=1 // pred_check
      _
    $region19: #{tpu_custom_call.1} parent=1 // pred_check_branch
      %23 = sbr.rel (0) target = $region21
    $region20: #{tpu_custom_call.1} parent=1 // pred_region
      _
    $region21: #{tpu_custom_call.1} parent=1 // pred_fallthru
      _
    // Predicated region
    $region22: #{tpu_custom_call.1} parent=1 // pred_check
      _
    $region23: #{tpu_custom_call.1} parent=1 // pred_check_branch
      %25 = sbr.rel (0) target = $region25
    $region24: #{tpu_custom_call.1} parent=1 // pred_region
      _
    $region25: #{tpu_custom_call.1} parent=1 // pred_fallthru
      _
    // Predicated region
    $region26: #{tpu_custom_call.1} parent=1 // pred_check
      _
    $region27: #{tpu_custom_call.1} parent=1 // pred_check_branch
      %27 = sbr.rel (0) target = $region29
    $region28: #{tpu_custom_call.1} parent=1 // pred_region
      _
    $region29: #{tpu_custom_call.1} parent=1 // pred_fallthru
      _
    %v28 = vld [vmem:[%s0] sm:$0xff]
    %v29 = vld [vmem:[%s1] sm:$0xff]
    %v30 = vld [vmem:[%s1 + $0x8] sm:$0xff]
    %v31 = vld [vmem:[%s1 + $0x10] sm:$0xff]
    %v32 = vld [vmem:[%s1 + $0x18] sm:$0xff]
    %v33 = vld [vmem:[%s2] sm:$0xff]
    %v34 = vld [vmem:[%s2 + $0x8] sm:$0xff]
    %v35 = vld [vmem:[%s2 + $0x10] sm:$0xff]
    %v36 = vld [vmem:[%s2 + $0x18] sm:$0xff]
    %38 = vset.pattern.permute.xlu0 0
    %39 = vperm.xlu0 %38, %v33
    %v40 = vpop.permute.xlu0 %39
    %43 = vset.pattern.permute.xlu0 0
    %44 = vperm.xlu0 %43, %v34
    %v45 = vpop.permute.xlu0 %44
    %48 = vset.pattern.permute.xlu0 0
    %49 = vperm.xlu0 %48, %v35
    %v50 = vpop.permute.xlu0 %49
    %53 = vset.pattern.permute.xlu0 0
    %54 = vperm.xlu0 %53, %v36
    %v55 = vpop.permute.xlu0 %54
    %vm57 = vcmask 130048
    %v59 = vsel %vm57, %v29, 0
    %v62 = vsel %vm57, %v30, 0
    %v65 = vsel %vm57, %v31, 0
    %v68 = vsel %vm57, %v32, 0
    %v71 = vsel %vm57, %v28, 0
    %73 = vmatpush.xpose.msra.mxu0 0.0
    %74 = vmatpush.xpose.msra.mxu0 0.0
    %75 = vmatpush.xpose.msra.mxu0 0.0
    %76 = vmatpush.xpose.msra.mxu0 0.0
    %77 = vmatpush.xpose.msra.mxu0 0.0
    %78 = vmatpush.xpose.msra.mxu0 0.0
    %79 = vmatpush.xpose.msra.mxu0 0.0
    %80 = vmatpush.xpose.msra.mxu0 0.0
    %81 = vmatpush.xpose.msra.mxu0 0.0
    %82 = vmatpush.xpose.msra.mxu0 0.0
    %83 = vmatpush.xpose.msra.mxu0 0.0
    %84 = vmatpush.xpose.msra.mxu0 0.0
    %85 = vmatpush.xpose.msra.mxu0 0.0
    %86 = vmatpush.xpose.msra.mxu0 0.0
    %87 = vmatpush.xpose.msra.mxu0 0.0
    %88 = vmatpush.xpose.msra.mxu0 %v71
    %89 = vmatmul.f32.gmra.mxu0 %v59
    %v90 = vpop.f32.mrf.mxu0
    %v91 = vadd.f32 %v40, %v90
    %92 = vmatmul.f32.gmra.mxu0 %v62
    %v93 = vpop.f32.mrf.mxu0
    %v94 = vadd.f32 %v45, %v93
    %95 = vmatmul.f32.gmra.mxu0 %v65
    %v96 = vpop.f32.mrf.mxu0
    %v97 = vadd.f32 %v50, %v96
    %98 = vmatmul.f32.gmra.mxu0 %v68
    %v99 = vpop.f32.mrf.mxu0
    %v100 = vadd.f32 %v55, %v99
    %101 = vdwg.mxu0
    %v102 = vtanh.pop %v91
    %v103 = vtanh.pop %v94
    %v104 = vtanh.pop %v97
    %v105 = vtanh.pop %v100
    %v106 = vld [vmem:[%s3] sm:$0xff]
    %v107 = vld [vmem:[%s3 + $0x8] sm:$0xff]
    %v108 = vld [vmem:[%s3 + $0x10] sm:$0xff]
    %v109 = vld [vmem:[%s3 + $0x18] sm:$0xff]
    %v110 = vld [vmem:[%s4] sm:$0xff]
    %v111 = vld [vmem:[%s4 + $0x8] sm:$0xff]
    %v112 = vld [vmem:[%s4 + $0x10] sm:$0xff]
    %v113 = vld [vmem:[%s4 + $0x18] sm:$0xff]
    %115 = vset.pattern.permute.xlu0 0
    %116 = vperm.xlu0 %115, %v110
    %v117 = vpop.permute.xlu0 %116
    %120 = vset.pattern.permute.xlu0 0
    %121 = vperm.xlu0 %120, %v111
    %v122 = vpop.permute.xlu0 %121
    %125 = vset.pattern.permute.xlu0 0
    %126 = vperm.xlu0 %125, %v112
    %v127 = vpop.permute.xlu0 %126
    %130 = vset.pattern.permute.xlu0 0
    %131 = vperm.xlu0 %130, %v113
    %v132 = vpop.permute.xlu0 %131
    %vm134 = vcmask 261120
    %v136 = vsel %vm134, %v106, 0
    %v139 = vsel %vm134, %v107, 0
    %v142 = vsel %vm134, %v108, 0
    %v145 = vsel %vm134, %v109, 0
    %147 = vmatpush.msra.mxu0 0.0
    %148 = vmatpush.msra.mxu0 0.0
    %149 = vmatpush.msra.mxu0 0.0
    %150 = vmatpush.msra.mxu0 0.0
    %151 = vmatpush.msra.mxu0 0.0
    %152 = vmatpush.msra.mxu0 0.0
    %153 = vmatpush.msra.mxu0 0.0
    %154 = vmatpush.msra.mxu0 0.0
    %155 = vmatpush.msra.mxu0 0.0
    %156 = vmatpush.msra.mxu0 0.0
    %157 = vmatpush.msra.mxu0 0.0
    %158 = vmatpush.msra.mxu0 0.0
    %159 = vmatpush.msra.mxu0 %v105
    %160 = vmatpush.msra.mxu0 %v104
    %161 = vmatpush.msra.mxu0 %v103
    %162 = vmatpush.msra.mxu0 %v102
    %163 = vmatmul.f32.gmra.mxu0 %v136
    %v164 = vpop.f32.mrf.mxu0
    %v165 = vadd.f32 %v117, %v164
    %166 = vmatmul.f32.gmra.mxu0 %v139
    %v167 = vpop.f32.mrf.mxu0
    %v168 = vadd.f32 %v122, %v167
    %169 = vmatmul.f32.gmra.mxu0 %v142
    %v170 = vpop.f32.mrf.mxu0
    %v171 = vadd.f32 %v127, %v170
    %172 = vmatmul.f32.gmra.mxu0 %v145
    %v173 = vpop.f32.mrf.mxu0
    %v174 = vadd.f32 %v132, %v173
    %175 = vdwg.mxu0
    %v176 = vtanh.pop %v165
    %v177 = vtanh.pop %v168
    %v178 = vtanh.pop %v171
    %v179 = vtanh.pop %v174
    %v180 = vld [vmem:[%s5] sm:$0x1]
    %s181 = sld [smem:[#allocation2]]
    %v182 = vstv %s181
    %v184 = vsel %vm134, %v180, 0
    %186 = vmatpush.msra.mxu0 0.0
    %187 = vmatpush.msra.mxu0 0.0
    %188 = vmatpush.msra.mxu0 0.0
    %189 = vmatpush.msra.mxu0 0.0
    %190 = vmatpush.msra.mxu0 0.0
    %191 = vmatpush.msra.mxu0 0.0
    %192 = vmatpush.msra.mxu0 0.0
    %193 = vmatpush.msra.mxu0 0.0
    %194 = vmatpush.msra.mxu0 0.0
    %195 = vmatpush.msra.mxu0 0.0
    %196 = vmatpush.msra.mxu0 0.0
    %197 = vmatpush.msra.mxu0 0.0
    %198 = vmatpush.msra.mxu0 %v179
    %199 = vmatpush.msra.mxu0 %v178
    %200 = vmatpush.msra.mxu0 %v177
    %201 = vmatpush.msra.mxu0 %v176
    %202 = vmatmul.f32.gmra.mxu0 %v184
    %v203 = vpop.f32.mrf.mxu0
    %v204 = vadd.f32 %v182, %v203
    %205 = vdwg.mxu0
    %vm206 = vcmask 57344
    %207 = vst.msk [vmem:[#allocation3] sm:$0x1] %vm206, %v204
    // Predicated region
    $region30: #{tpu_custom_call.1} parent=1 // pred_check
      _
    $region31: #{tpu_custom_call.1} parent=1 // pred_check_branch
      %209 = sbr.rel (0) target = $region33
    $region32: #{tpu_custom_call.1} parent=1 // pred_region
      %211 = vsyncadd [#allocation4], 0
      %s213 = sshll.u32 [#allocation3], 4
      %s214 = int_to_ptr.vmem [resolvable:$true] %s213
      %s215 = sshll.u32 %s7, 4
      %s216 = int_to_ptr.hbm [resolvable:$true] %s215
      %218 = dma.vmem_to_hbm [thread:$0]  %s214, 16, %s216, [#allocation4]
    $region33: #{tpu_custom_call.1} parent=1 // pred_fallthru
      _
    // Predicated region
    $region34: #{tpu_custom_call.1} parent=1 // pred_check
      _
    $region35: #{tpu_custom_call.1} parent=1 // pred_check_branch
      %220 = sbr.rel (0) target = $region37
    $region36: #{tpu_custom_call.1} parent=1 // pred_region
      %222 = dma.done [#allocation4], 16
    $region37: #{tpu_custom_call.1} parent=1 // pred_fallthru
      _
    %223 = vsyncpa [#allocation4], 1

</llo_original>
